<compile_context>
chip_gen: v7x
topology: tpu7x:2x2x1
jax: 0.10.0
libtpu: 0.0.40
codegen_flags: <defaults>
</compile_context>

<pallas_src>
import numpy as np
import jax
import jax.numpy as jnp
from jax.experimental import pallas as pl
from jax.experimental.pallas import tpu as pltpu


def _round_up(a: int, b: int) -> int:
    return (a + b - 1) // b * b


def _make_gaussian_taps(ksize: int, sigma: float) -> np.ndarray:
    """Deterministic normalized 1-D Gaussian taps (float32)."""
    ax = np.arange(ksize, dtype=np.float64) - (ksize - 1) / 2.0
    g1 = np.exp(-(ax ** 2) / (2.0 * sigma ** 2))
    return (g1 / g1.sum()).astype(np.float32)


def gaussian_blur(x: jax.Array, taps_1d) -> jax.Array:
    """Per-channel 'same' Gaussian blur of x: (N, C, H, W); separable taps."""
    taps = [float(t) for t in np.asarray(taps_1d, dtype=np.float64)]
    K = len(taps)
    assert K % 2 == 1, "kernel size must be odd."
    # The paired-roll formulation below requires symmetric taps.
    assert np.allclose(taps, taps[::-1]), "separable taps must be symmetric."
    pad = K // 2

    N, C, H, W = x.shape
    P = N * C
    orig_dtype = x.dtype

    # ---- packed-slab geometry (trailing-only padding) -----------------------
    Sw = W + pad                       # strip width  = valid cols + zero gap
    Hp = _round_up(H + pad, 8)         # strip height = valid rows + zero rows
    Wp = _round_up(Sw, 128)            # slab lane width (>= one lane tile)

    G_cap = max(1, Wp // Sw)           # strips that fit side-by-side in Wp lanes
    # Keep >= 2 strip rows whenever P >= 2 so the plane-axis grid has >= 2
    # steps (megacore / v7x can shard them across TensorCores).
    G = min(G_cap, max(1, -(-P // 2))) if P >= 2 else min(G_cap, max(P, 1))
    Prow = -(-P // G)                  # number of strip rows
    Ppad = Prow * G                    # planes incl. zero filler planes

    # ---- wrapper-side packing into a compact, aligned slab ------------------
    xf = x.reshape(P, H, W).astype(jnp.float32)
    xf = jnp.pad(xf, ((0, Ppad - P), (0, 0), (0, 0)))            # filler planes
    xf = xf.reshape(Prow, G, H, W)
    xf = jnp.pad(xf, ((0, 0), (0, 0), (0, Hp - H), (0, Sw - W))) # trailing pad
    xf = xf.transpose(0, 2, 1, 3).reshape(Prow, Hp, G * Sw)      # strips along lanes
    xf = jnp.pad(xf, ((0, 0), (0, 0), (0, Wp - G * Sw)))
    slab = xf.reshape(Prow * Hp, Wp)                             # (Prow*Hp, Wp)

    # ---- block sizing against the real live set ------------------------------
    row_bytes = Hp * Wp * 4
    live_factor = 6                    # 2x in + 2x out (double buffers) + tmp + acc
    budget = 12 * 1024 * 1024          # safe vs v5e(16M)/v6e/v7x(32M) scoped VMEM
    max_rows = max(1, budget // (live_factor * row_bytes))
    if Prow >= 2:                      # keep >= 2 grid steps for megacore
        max_rows = min(max_rows, Prow // 2)
    RB = max(d for d in range(1, Prow + 1) if Prow % d == 0 and d <= max_rows)
    nblk = Prow // RB
    BH = RB * Hp                       # block height (multiple of 8)

    c0 = taps[pad]

    def blur_kernel(x_ref, o_ref):
        xb = x_ref[...]                                    # (BH, Wp) f32, aligned
        # Horizontal pass (lane axis). Symmetric taps: one multiply per pair;
        # roll wrap-around reads only trailing-zero lanes for kept pixels.
        tmp = c0 * xb
        for s in range(1, pad + 1):
            pair = pltpu.roll(xb, s, axis=1) + pltpu.roll(xb, Wp - s, axis=1)
            tmp = tmp + taps[pad + s] * pair
        # Vertical pass (sublane axis); wrap-around reads only trailing-zero rows.
        acc = c0 * tmp
        for s in range(1, pad + 1):
            pair = pltpu.roll(tmp, s, axis=0) + pltpu.roll(tmp, BH - s, axis=0)
            acc = acc + taps[pad + s] * pair
        # Lane-dense, fully aligned store of the whole block.
        o_ref[...] = acc

    out_slab = pl.pallas_call(
        blur_kernel,
        out_shape=jax.ShapeDtypeStruct((Prow * Hp, Wp), jnp.float32),
        grid=(nblk,),
        in_specs=[pl.BlockSpec((BH, Wp), lambda b: (b, 0))],
        out_specs=pl.BlockSpec((BH, Wp), lambda b: (b, 0)),
        compiler_params=pltpu.CompilerParams(
            dimension_semantics=("parallel",),
            vmem_limit_bytes=32 * 1024 * 1024),
    )(slab)

    # ---- wrapper-side un-packing (aligned static slices) ---------------------
    planes = out_slab.reshape(Prow, Hp, Wp)[:, :H, :]            # (Prow, H, Wp)
    strips = jnp.stack([planes[:, :, g * Sw:g * Sw + W] for g in range(G)],
                       axis=1)                                   # (Prow, G, H, W)
    out = strips.reshape(Ppad, H, W)[:P].reshape(N, C, H, W)
    return out.astype(orig_dtype)


def _reference_blur(x: jax.Array, kernel2d: jax.Array) -> jax.Array:
    """Pure-JAX reference (per-channel cross-correlation, zero 'same' pad)."""
    K = kernel2d.shape[0]
    w = jnp.broadcast_to(kernel2d[None, None], (x.shape[1], 1, K, K))
    return jax.lax.conv_general_dilated(
        x, w, window_strides=(1, 1), padding="SAME",
        dimension_numbers=("NCHW", "OIHW", "NCHW"),
        feature_group_count=x.shape[1])


if __name__ == "__main__":
    # Deterministic Gaussian kernel (size 5, sigma 1.0); the nn.Module would
    # receive the 2-D nested list np.outer(g1, g1).
    K = 5
    g1 = _make_gaussian_taps(K, sigma=1.0)
    kernel2d = np.outer(g1, g1).astype(np.float32)

    # Small deterministic input consistent with the forward: N=2, C=3, 16x16.
    key = jax.random.PRNGKey(0)
    x = jax.random.normal(key, (2, 3, 16, 16), dtype=jnp.float32)

    blur = jax.jit(lambda xx: gaussian_blur(xx, g1))
    out = jax.block_until_ready(blur(x))

    ref = jax.block_until_ready(_reference_blur(x, jnp.asarray(kernel2d)))
    assert out.shape == (2, 3, 16, 16)
    np.testing.assert_allclose(np.asarray(out), np.asarray(ref),
                               rtol=1e-5, atol=1e-5)
    print("KERNEL_OK")
</pallas_src>

<mosaic_0001>
module attributes {stable_mosaic.version = 11 : i64} {
  func.func @blur_kernel(%arg0: i32, %arg1: memref<24x128xf32, #tpu.memory_space<vmem>>, %arg2: memref<24x128xf32, #tpu.memory_space<vmem>>) attributes {dimension_semantics = [#tpu.dimension_semantics<parallel>], iteration_bounds = array<i64: 2>, scalar_prefetch = 0 : i64, scratch_operands = 0 : i64, tpu.core_type = #tpu.core_type<tc>, window_params = [{transform_indices = @transform_0, window_bounds = array<i64: 24, 128>}, {transform_indices = @transform_1, window_bounds = array<i64: 24, 128>}]} {
    %c0 = arith.constant 0 : index
    %c0_0 = arith.constant 0 : index
    %0 = vector.load %arg1[%c0, %c0_0] : memref<24x128xf32, #tpu.memory_space<vmem>>, vector<24x128xf32>
    %cst = arith.constant 0.402619958 : f32
    %1 = vector.broadcast %cst : f32 to vector<24x128xf32>
    %2 = arith.mulf %1, %0 : vector<24x128xf32>
    %c1_i32 = arith.constant 1 : i32
    %3 = tpu.dynamic_rotate %0 by %c1_i32 dim 1 : vector<24x128xf32>, i32 -> vector<24x128xf32>
    %c127_i32 = arith.constant 127 : i32
    %4 = tpu.dynamic_rotate %0 by %c127_i32 dim 1 : vector<24x128xf32>, i32 -> vector<24x128xf32>
    %5 = arith.addf %3, %4 : vector<24x128xf32>
    %cst_1 = arith.constant 0.244201347 : f32
    %6 = vector.broadcast %cst_1 : f32 to vector<24x128xf32>
    %7 = arith.mulf %6, %5 : vector<24x128xf32>
    %8 = arith.addf %2, %7 : vector<24x128xf32>
    %c2_i32 = arith.constant 2 : i32
    %9 = tpu.dynamic_rotate %0 by %c2_i32 dim 1 : vector<24x128xf32>, i32 -> vector<24x128xf32>
    %c126_i32 = arith.constant 126 : i32
    %10 = tpu.dynamic_rotate %0 by %c126_i32 dim 1 : vector<24x128xf32>, i32 -> vector<24x128xf32>
    %11 = arith.addf %9, %10 : vector<24x128xf32>
    %cst_2 = arith.constant 0.054488685 : f32
    %12 = vector.broadcast %cst_2 : f32 to vector<24x128xf32>
    %13 = arith.mulf %12, %11 : vector<24x128xf32>
    %14 = arith.addf %8, %13 : vector<24x128xf32>
    %cst_3 = arith.constant 0.402619958 : f32
    %15 = vector.broadcast %cst_3 : f32 to vector<24x128xf32>
    %16 = arith.mulf %15, %14 : vector<24x128xf32>
    %c1_i32_4 = arith.constant 1 : i32
    %17 = tpu.dynamic_rotate %14 by %c1_i32_4 dim 0 : vector<24x128xf32>, i32 -> vector<24x128xf32>
    %c23_i32 = arith.constant 23 : i32
    %18 = tpu.dynamic_rotate %14 by %c23_i32 dim 0 : vector<24x128xf32>, i32 -> vector<24x128xf32>
    %19 = arith.addf %17, %18 : vector<24x128xf32>
    %cst_5 = arith.constant 0.244201347 : f32
    %20 = vector.broadcast %cst_5 : f32 to vector<24x128xf32>
    %21 = arith.mulf %20, %19 : vector<24x128xf32>
    %22 = arith.addf %16, %21 : vector<24x128xf32>
    %c2_i32_6 = arith.constant 2 : i32
    %23 = tpu.dynamic_rotate %14 by %c2_i32_6 dim 0 : vector<24x128xf32>, i32 -> vector<24x128xf32>
    %c22_i32 = arith.constant 22 : i32
    %24 = tpu.dynamic_rotate %14 by %c22_i32 dim 0 : vector<24x128xf32>, i32 -> vector<24x128xf32>
    %25 = arith.addf %23, %24 : vector<24x128xf32>
    %cst_7 = arith.constant 0.054488685 : f32
    %26 = vector.broadcast %cst_7 : f32 to vector<24x128xf32>
    %27 = arith.mulf %26, %25 : vector<24x128xf32>
    %28 = arith.addf %22, %27 : vector<24x128xf32>
    %c0_8 = arith.constant 0 : index
    %c0_9 = arith.constant 0 : index
    %29 = vector.load %arg2[%c0_8, %c0_9] : memref<24x128xf32, #tpu.memory_space<vmem>>, vector<24x128xf32>
    tpu.vector_store %arg2[%c0_8, %c0_9], %28 {strides = array<i32>} : memref<24x128xf32, #tpu.memory_space<vmem>>, vector<24x128xf32>,
    return
  }
  func.func @transform_0(%arg0: i32) -> (i32, i32) {
    %c0_i32 = arith.constant 0 : i32
    %c0_i32_0 = arith.constant 0 : i32
    return %arg0, %c0_i32 : i32, i32
  }
  func.func @transform_1(%arg0: i32) -> (i32, i32) {
    %c0_i32 = arith.constant 0 : i32
    %c0_i32_0 = arith.constant 0 : i32
    return %arg0, %c0_i32 : i32, i32
  }
}

</mosaic_0001>

<llo_original>
// kernel: _lambda_.1
$region0: #{_lambda_.1}
  #allocation0 [shape = 'u32[]', space=smem, size = 0x4, offset = 0x4, fixed_abs, tag = 'smem constant byte address 0x4 - core index']
  #allocation1 [shape = 'u32[144,128]{1,0:T(1,128)}', space=vmem, size = 0x12000, scoped, tag = 'internal scratch']
  %s0 = inlined_call_operand.vmem [shape: f32[48,128], index: 0, kind: input, shape index: {}]
  %s1 = inlined_call_operand.vmem [shape: f32[48,128], index: 1, kind: output, shape index: {}]
  %s2 = sld [smem:[#allocation0]]
  $region37: #{_lambda_.1} parent=0
    _
  %s4 = ssub.s32 1, %s2
  %s5 = scalar_select 0, %s4, %s2
  loop: start=0, step=1, limit=4
  $region2: #{_lambda_.1} parent=0 // loop_pre_header
    _
  $region3: #{_lambda_.1} parent=0 // loop_header
    %s7 = sphi 0, %s11
    %p8 = scmp.ge.s32.totalorder %s7, 4
    %s17 = sphi 0, %s19
    %s20 = sphi 0, %s17
    %s21 = sphi 0, %s20
    %s37 = sphi 0, %s21
    %s43 = sphi 0, %s45
    %s46 = sphi 0, %s43
    %s47 = sphi 0, %s46
    %s63 = sphi 0, %s47
  $region4: #{_lambda_.1} parent=0 // loop_header_branch
    %10 = sbr.rel (%p8) target = $region8
  $region5: #{_lambda_.1} parent=0 // loop_body
    %s12 = ssub.s32 %s7, 1
    %s13 = ssub.s32 %s7, 2
    %s14 = sadd.s32 %s7, 1
    %s15 = ssub.s32 %s7, %s14
    %p16 = scmp.eq.s32.totalorder %s15, 0
    %s18 = sadd.s32 %s17, 1
    %s19 = scalar_select %p16, %s17, %s18
    %p22 = pneg %p16
    %p23 = scmp.eq.s32.totalorder %s7, 1
    %p24 = por %p22, %p23
    %p25 = scmp.ne.s32.totalorder %s17, %s20
    %p26 = scmp.eq.s32.totalorder %s7, 0
    %p27 = por %p25, %p26
    %p28 = scmp.ne.s32.totalorder %s17, %s20
    %p29 = scmp.eq.s32.totalorder %s12, 1
    %p30 = por %p28, %p29
    %p31 = scmp.ne.s32.totalorder %s20, %s21
    %p32 = scmp.eq.s32.totalorder %s12, 0
    %p33 = por %p31, %p32
    %p34 = scmp.ne.s32.totalorder %s20, %s21
    %p35 = scmp.eq.s32.totalorder %s13, 1
    %p36 = por %p34, %p35
    %p38 = scmp.ne.s32.totalorder %s21, %s37
    %p39 = scmp.eq.s32.totalorder %s13, 0
    %p40 = por %p38, %p39
    %s41 = ssub.s32 %s7, %s14
    %p42 = scmp.eq.s32.totalorder %s41, 0
    %s44 = sadd.s32 %s43, 1
    %s45 = scalar_select %p42, %s43, %s44
    %p48 = pneg %p42
    %p49 = scmp.eq.s32.totalorder %s7, 1
    %p50 = por %p48, %p49
    %p51 = scmp.ne.s32.totalorder %s43, %s46
    %p52 = scmp.eq.s32.totalorder %s7, 0
    %p53 = por %p51, %p52
    %p54 = scmp.ne.s32.totalorder %s43, %s46
    %p55 = scmp.eq.s32.totalorder %s12, 1
    %p56 = por %p54, %p55
    %p57 = scmp.ne.s32.totalorder %s46, %s47
    %p58 = scmp.eq.s32.totalorder %s12, 0
    %p59 = por %p57, %p58
    %p60 = scmp.ne.s32.totalorder %s46, %s47
    %p61 = scmp.eq.s32.totalorder %s13, 1
    %p62 = por %p60, %p61
    %p64 = scmp.ne.s32.totalorder %s47, %s63
    %p65 = scmp.eq.s32.totalorder %s13, 0
    %p66 = por %p64, %p65
    %p67 = scmp.le.s32.totalorder 1, %s7
    %p68 = scmp.lt.s32.totalorder %s7, 3
    %p69 = pnand %p67, %p68
    %p70 = pneg %p69
    // Predicated region
    $region9: #{_lambda_.1} parent=5 // pred_check
      _
    $region10: #{_lambda_.1} parent=5 // pred_check_branch
      %72 = sbr.rel (%p69) target = $region12
    $region11: #{_lambda_.1} parent=5 // pred_region
      %s73 = ssub.s32 %s7, 1
    $region12: #{_lambda_.1} parent=5 // pred_fallthru
      _
    %p74 = scmp.lt.s32.totalorder %s7, 2
    // Predicated region
    $region13: #{_lambda_.1} parent=5 // pred_check
      %p75 = pneg %p74
    $region14: #{_lambda_.1} parent=5 // pred_check_branch
      %77 = sbr.rel (%p75) target = $region16
    $region15: #{_lambda_.1} parent=5 // pred_region
      // Predicated region
      $region17: #{_lambda_.1} parent=15 // pred_check
        %p78 = pneg %p27
      $region18: #{_lambda_.1} parent=15 // pred_check_branch
        %80 = sbr.rel (%p78) target = $region20
      $region19: #{_lambda_.1} parent=15 // pred_region
        %s81 = smul.u32 3, %s7
        %p82 = scmp.lt.s32.totalorder %s81, 5
        %s83 = scalar_select %p82, %s81, 5
        %s84 = smul.addr %s83, 8
        %s85 = scalar_lea.vmem %s0, %s84
        %s86 = smul.u32 3, %s7
      $region20: #{_lambda_.1} parent=15 // pred_fallthru
        _
    $region16: #{_lambda_.1} parent=5 // pred_fallthru
      _
    %p87 = scmp.le.s32.totalorder 1, %s7
    %p88 = scmp.lt.s32.totalorder %s7, 3
    %p89 = pnand %p87, %p88
    %p90 = pneg %p89
    // Predicated region
    $region21: #{_lambda_.1} parent=5 // pred_check
      _
    $region22: #{_lambda_.1} parent=5 // pred_check_branch
      %92 = sbr.rel (%p89) target = $region24
    $region23: #{_lambda_.1} parent=5 // pred_region
      %s93 = ssub.s32 %s7, 1
      %s94 = smul.u32 3, %s12
      %p95 = scmp.lt.s32.totalorder %s94, 5
      %s96 = scalar_select %p95, %s94, 5
      %s97 = smul.addr %s96, 8
      %s98 = scalar_lea.vmem %s0, %s97
      %p99 = pneg %p33
      %p100 = pneg %p30
      %p101 = pneg %p59
      %p102 = pneg %p56
      %s103 = smul.u32 3, %s12
      %p104 = scmp.lt.s32.totalorder %s103, 5
      %s105 = scalar_select %p104, %s103, 5
      %s106 = smul.addr %s105, 8
      %s107 = scalar_lea.vmem %s1, %s106
      %s108 = smul.u32 3, %s12
      %p109 = scmp.lt.s32.totalorder %s108, 5
      %s110 = scalar_select %p109, %s108, 5
      %s111 = smul.addr %s110, 8
      %s112 = scalar_lea.vmem %s0, %s111
      %s113 = smul.u32 3, %s12
      %s114 = smul.u32 3, %s12
      %p115 = scmp.lt.s32.totalorder %s114, 5
      %s116 = scalar_select %p115, %s114, 5
      %s117 = smul.addr %s116, 8
      %s118 = scalar_lea.vmem %s1, %s117
      %s119 = smul.u32 3, %s12
      %v120 = vld [vmem:[%s112] sm:$0xff]
      %v121 = vld [vmem:[%s112 + $0x8] sm:$0xff]
      %v122 = vld [vmem:[%s112 + $0x10] sm:$0xff]
      %v123 = vmul.f32 %v120, 0.40261996
      %v124 = vmul.f32 %v121, 0.40261996
      %v125 = vmul.f32 %v122, 0.40261996
      %126 = vrot.lane.b32.xlu0 %v120, 1
      %v127 = vpop.permute.xlu0 %126
      %128 = vrot.lane.b32.xlu0 %v121, 1
      %v129 = vpop.permute.xlu0 %128
      %130 = vrot.lane.b32.xlu0 %v122, 1
      %v131 = vpop.permute.xlu0 %130
      %132 = vrot.lane.b32.xlu0 %v120, 127
      %v133 = vpop.permute.xlu0 %132
      %134 = vrot.lane.b32.xlu0 %v121, 127
      %v135 = vpop.permute.xlu0 %134
      %136 = vrot.lane.b32.xlu0 %v122, 127
      %v137 = vpop.permute.xlu0 %136
      %v138 = vadd.f32 %v127, %v133
      %v139 = vadd.f32 %v129, %v135
      %v140 = vadd.f32 %v131, %v137
      %v141 = vmul.f32 %v138, 0.24420135
      %v142 = vmul.f32 %v139, 0.24420135
      %v143 = vmul.f32 %v140, 0.24420135
      %v144 = vadd.f32 %v123, %v141
      %v145 = vadd.f32 %v124, %v142
      %v146 = vadd.f32 %v125, %v143
      %147 = vrot.lane.b32.xlu0 %v120, 2
      %v148 = vpop.permute.xlu0 %147
      %149 = vrot.lane.b32.xlu0 %v121, 2
      %v150 = vpop.permute.xlu0 %149
      %151 = vrot.lane.b32.xlu0 %v122, 2
      %v152 = vpop.permute.xlu0 %151
      %153 = vrot.lane.b32.xlu0 %v120, 126
      %v154 = vpop.permute.xlu0 %153
      %155 = vrot.lane.b32.xlu0 %v121, 126
      %v156 = vpop.permute.xlu0 %155
      %157 = vrot.lane.b32.xlu0 %v122, 126
      %v158 = vpop.permute.xlu0 %157
      %v159 = vadd.f32 %v148, %v154
      %v160 = vadd.f32 %v150, %v156
      %v161 = vadd.f32 %v152, %v158
      %v162 = vmul.f32 %v159, 0.054488685
      %v163 = vmul.f32 %v160, 0.054488685
      %v164 = vmul.f32 %v161, 0.054488685
      %v165 = vadd.f32 %v144, %v162
      %v166 = vadd.f32 %v145, %v163
      %v167 = vadd.f32 %v146, %v164
      %v168 = vmul.f32 %v165, 0.40261996
      %v169 = vmul.f32 %v166, 0.40261996
      %v170 = vmul.f32 %v167, 0.40261996
      %v171 = vrot.slane %v165, 7
      %v172 = vrot.slane %v166, 7
      %v173 = vrot.slane %v167, 7
      %v174 = vlaneseq
      %v175 = vshrl.u32 %v174, 7
      %vm176 = vcmp.lt.s32.totalorder %v175, 1
      %v177 = vsel %vm176, %v172, %v173
      %v178 = vsel %vm176, %v171, %v172
      %v179 = vsel %vm176, %v173, %v171
      %v180 = vrot.slane %v165, 1
      %v181 = vrot.slane %v166, 1
      %v182 = vrot.slane %v167, 1
      %vm183 = vcmp.lt.s32.totalorder %v175, 7
      %v184 = vsel %vm183, %v181, %v182
      %v185 = vsel %vm183, %v180, %v181
      %v186 = vsel %vm183, %v182, %v180
      %v187 = vadd.f32 %v179, %v185
      %v188 = vadd.f32 %v178, %v184
      %v189 = vadd.f32 %v177, %v186
      %v190 = vmul.f32 %v187, 0.24420135
      %v191 = vmul.f32 %v188, 0.24420135
      %v192 = vmul.f32 %v189, 0.24420135
      %v193 = vadd.f32 %v168, %v190
      %v194 = vadd.f32 %v169, %v191
      %v195 = vadd.f32 %v170, %v192
      %v196 = vrot.slane %v165, 6
      %v197 = vrot.slane %v166, 6
      %v198 = vrot.slane %v167, 6
      %vm199 = vcmp.lt.s32.totalorder %v175, 2
      %v200 = vsel %vm199, %v197, %v198
      %v201 = vsel %vm199, %v196, %v197
      %v202 = vsel %vm199, %v198, %v196
      %v203 = vrot.slane %v165, 2
      %v204 = vrot.slane %v166, 2
      %v205 = vrot.slane %v167, 2
      %vm206 = vcmp.lt.s32.totalorder %v175, 6
      %v207 = vsel %vm206, %v204, %v205
      %v208 = vsel %vm206, %v203, %v204
      %v209 = vsel %vm206, %v205, %v203
      %v210 = vadd.f32 %v202, %v208
      %v211 = vadd.f32 %v201, %v207
      %v212 = vadd.f32 %v200, %v209
      %v213 = vmul.f32 %v210, 0.054488685
      %v214 = vmul.f32 %v211, 0.054488685
      %v215 = vmul.f32 %v212, 0.054488685
      %v216 = vadd.f32 %v193, %v213
      %v217 = vadd.f32 %v194, %v214
      %v218 = vadd.f32 %v195, %v215
      %219 = vst [vmem:[%s118] sm:$0xff] %v216
      %220 = vst [vmem:[%s118 + $0x8] sm:$0xff] %v217
      %221 = vst [vmem:[%s118 + $0x10] sm:$0xff] %v218
      %s222 = smul.u32 3, %s12
      %p223 = scmp.lt.s32.totalorder %s222, 5
      %s224 = scalar_select %p223, %s222, 5
      %s225 = smul.addr %s224, 8
      %s226 = scalar_lea.vmem %s1, %s225
      // Predicated region
      $region25: #{_lambda_.1} parent=23 // pred_check
        %p227 = pneg %p56
      $region26: #{_lambda_.1} parent=23 // pred_check_branch
        %229 = sbr.rel (%p227) target = $region28
      $region27: #{_lambda_.1} parent=23 // pred_region
        %s230 = smul.u32 3, %s12
      $region28: #{_lambda_.1} parent=23 // pred_fallthru
        _
    $region24: #{_lambda_.1} parent=5 // pred_fallthru
      _
    %p231 = scmp.le.s32.totalorder 2, %s7
    // Predicated region
    $region29: #{_lambda_.1} parent=5 // pred_check
      %p232 = pneg %p231
    $region30: #{_lambda_.1} parent=5 // pred_check_branch
      %234 = sbr.rel (%p232) target = $region32
    $region31: #{_lambda_.1} parent=5 // pred_region
      %s235 = ssub.s32 %s7, 2
      // Predicated region
      $region33: #{_lambda_.1} parent=31 // pred_check
        %p236 = pneg %p62
      $region34: #{_lambda_.1} parent=31 // pred_check_branch
        %238 = sbr.rel (%p236) target = $region36
      $region35: #{_lambda_.1} parent=31 // pred_region
        %s239 = smul.u32 3, %s13
        %p240 = scmp.lt.s32.totalorder %s239, 5
        %s241 = scalar_select %p240, %s239, 5
        %s242 = smul.addr %s241, 8
        %s243 = scalar_lea.vmem %s1, %s242
      $region36: #{_lambda_.1} parent=31 // pred_fallthru
        _
    $region32: #{_lambda_.1} parent=5 // pred_fallthru
      _
  $region6: #{_lambda_.1} parent=0 // loop_footer
    %s11 = sadd.s32 1, %s7
  $region7: #{_lambda_.1} parent=0 // loop_footer_branch
    %6 = sbr.rel target = $region3
  $region8: #{_lambda_.1} parent=0 // loop_exit
    _

</llo_original>
